<compile_context>
chip_gen: v5e
topology: v5e:2x2
jax: 0.10.0
libtpu: 0.0.40
codegen_flags: <defaults>
</compile_context>

<pallas_src>
import functools

import jax
import jax.numpy as jnp
from jax.experimental import pallas as pl
from jax.experimental.pallas import tpu as pltpu


def _round_up(x, m):
    return ((x + m - 1) // m) * m


def _conv_bn_act_kernel(x_ref, w_ref, scale_ref, shift_ref, o_ref, *,
                        tap_shifts, tile_l, use_act):
    """Fused conv(3x3) + folded-BN + SiLU for one image.

    x_ref:     (1, C_in, L_in)       padded, row-flattened image (compute dtype)
    w_ref:     (KH*KW, C_out, C_in)  per-tap conv weights        (compute dtype)
    scale_ref: (C_out, 1) f32        folded BatchNorm scale
    shift_ref: (C_out, 1) f32        folded BatchNorm shift (+ conv bias)
    o_ref:     (1, C_out, L_pad)     lane-dense "wide" output (NCHW-major)
    """
    c_out, l_pad = o_ref.shape[1], o_ref.shape[2]
    scale = scale_ref[...]          # hoisted out of the tile loop
    shift = shift_ref[...]
    # Static loop over lane tiles of the flattened wide output; all slice
    # starts below are Python ints -> static VMEM accesses.
    for base in range(0, l_pad, tile_l):
        acc = jnp.zeros((c_out, tile_l), jnp.float32)
        for tap, s in enumerate(tap_shifts):
            x_sl = x_ref[0, :, base + s:base + s + tile_l]          # (C_in, tile_l)
            acc = acc + jnp.dot(w_ref[tap], x_sl,
                                preferred_element_type=jnp.float32)
        y = acc * scale + shift                                     # folded BN, f32
        if use_act:
            y = y * jax.nn.sigmoid(y)                               # SiLU, f32 epilogue
        o_ref[0, :, base:base + tile_l] = y.astype(o_ref.dtype)


def conv_layer_forward(x_nchw, weight, gamma=None, beta=None,
                       run_mean=None, run_var=None, bias=None, *,
                       stride=(1, 1), eps=1e-5, use_norm=True, use_act=True,
                       compute_dtype=jnp.bfloat16, out_dtype=None, tile_l=512):
    """ConvLayer.forward: Conv2d -> BatchNorm2d(eval) -> SiLU.  NCHW in/out."""
    N, C_in, H, W = x_nchw.shape
    C_out, C_in_w, KH, KW = weight.shape
    assert C_in_w == C_in, "only groups=1 supported"
    assert KH % 2 == 1 and KW % 2 == 1, "PyTorch 'same' fold assumes odd kernels"
    if isinstance(stride, int):
        stride = (stride, stride)
    assert tuple(stride) == (1, 1), "stride != 1 not implemented"

    out_dtype = x_nchw.dtype if out_dtype is None else out_dtype
    ph, pw = (KH - 1) // 2, (KW - 1) // 2
    Wp = W + 2 * pw                       # padded row width

    # Lane tiling of the flattened "wide" output (length H*Wp; cols >= W are
    # garbage that gets trimmed).  tile_l is a multiple of 128 -> lane dense.
    tile_l = max(128, _round_up(int(tile_l), 128))
    l_wide = H * Wp
    tile_l_eff = min(tile_l, _round_up(l_wide, 128))
    L_pad = _round_up(l_wide, tile_l_eff)
    tap_shifts = tuple(kh * Wp + kw for kh in range(KH) for kw in range(KW))
    L_in = _round_up(L_pad + tap_shifts[-1], 128)

    # Pad spatially once, flatten rows (native NCHW -> no transpose), then
    # zero-extend the tail so every shifted tile slice stays in bounds.
    xp = jnp.pad(x_nchw, ((0, 0), (0, 0), (ph, ph), (pw, pw)))
    xflat = xp.reshape(N, C_in, (H + 2 * ph) * Wp)
    xflat = jnp.pad(xflat, ((0, 0), (0, 0), (0, L_in - xflat.shape[-1])))
    xflat = xflat.astype(compute_dtype)

    # Per-tap weights: (KH*KW, C_out, C_in) so the contraction dim is C_in.
    w_taps = jnp.transpose(weight, (2, 3, 0, 1)).reshape(KH * KW, C_out, C_in)
    w_taps = w_taps.astype(compute_dtype)

    # Fold eval-mode BatchNorm (and optional conv bias) into scale/shift.
    if use_norm:
        inv = (gamma.astype(jnp.float32) /
               jnp.sqrt(run_var.astype(jnp.float32) + eps))
        scale = inv
        shift = beta.astype(jnp.float32) - run_mean.astype(jnp.float32) * inv
        if bias is not None:
            shift = shift + bias.astype(jnp.float32) * inv
    else:
        scale = jnp.ones((C_out,), jnp.float32)
        shift = (jnp.zeros((C_out,), jnp.float32) if bias is None
                 else bias.astype(jnp.float32))
    scale = scale.reshape(C_out, 1)
    shift = shift.reshape(C_out, 1)

    kernel = functools.partial(_conv_bn_act_kernel, tap_shifts=tap_shifts,
                               tile_l=tile_l_eff, use_act=use_act)

    out_wide = pl.pallas_call(
        kernel,
        out_shape=jax.ShapeDtypeStruct((N, C_out, L_pad), out_dtype),
        grid_spec=pltpu.PrefetchScalarGridSpec(
            num_scalar_prefetch=0,
            grid=(N,),
            in_specs=[
                pl.BlockSpec((1, C_in, L_in), lambda n: (n, 0, 0)),         # image
                pl.BlockSpec((KH * KW, C_out, C_in), lambda n: (0, 0, 0)),  # weights
                pl.BlockSpec((C_out, 1), lambda n: (0, 0)),                 # BN scale
                pl.BlockSpec((C_out, 1), lambda n: (0, 0)),                 # BN shift
            ],
            out_specs=pl.BlockSpec((1, C_out, L_pad), lambda n: (n, 0, 0)),
        ),
        compiler_params=pltpu.CompilerParams(
            dimension_semantics=("parallel",),
            vmem_limit_bytes=32 * 1024 * 1024),
    )(xflat, w_taps, scale, shift)

    # Trim wide columns; result is already NCHW-major -> no back-transpose.
    out = out_wide[:, :, :l_wide].reshape(N, C_out, H, Wp)[:, :, :, :W]
    return out


def _reference(x_nchw, weight, gamma, beta, run_mean, run_var, eps=1e-5):
    y = jax.lax.conv_general_dilated(
        x_nchw, weight, window_strides=(1, 1), padding=((1, 1), (1, 1)),
        dimension_numbers=("NCHW", "OIHW", "NCHW"))
    inv = gamma / jnp.sqrt(run_var + eps)
    y = y * inv.reshape(1, -1, 1, 1) + (beta - run_mean * inv).reshape(1, -1, 1, 1)
    return y * jax.nn.sigmoid(y)


if __name__ == "__main__":
    key = jax.random.PRNGKey(0)
    k_x, k_w, k_g, k_b, k_m, k_v = jax.random.split(key, 6)

    N, C_in, H, W = 2, 4, 16, 16
    C_out, KH, KW = 8, 3, 3

    x = jax.random.normal(k_x, (N, C_in, H, W), jnp.float32)
    weight = jax.random.normal(k_w, (C_out, C_in, KH, KW), jnp.float32) * 0.1
    gamma = 1.0 + 0.1 * jax.random.normal(k_g, (C_out,), jnp.float32)
    beta = 0.1 * jax.random.normal(k_b, (C_out,), jnp.float32)
    run_mean = 0.1 * jax.random.normal(k_m, (C_out,), jnp.float32)
    run_var = jnp.abs(1.0 + 0.1 * jax.random.normal(k_v, (C_out,), jnp.float32))

    ref = jax.block_until_ready(_reference(x, weight, gamma, beta, run_mean, run_var))

    # f32 compute path: tight numerical check against the XLA conv reference.
    fwd_f32 = jax.jit(functools.partial(conv_layer_forward,
                                        compute_dtype=jnp.float32))
    out_f32 = jax.block_until_ready(fwd_f32(x, weight, gamma, beta, run_mean, run_var))
    assert out_f32.shape == (N, C_out, H, W), out_f32.shape
    assert jnp.allclose(out_f32, ref, atol=2e-4, rtol=2e-4), "f32 mismatch vs reference"

    # Default bf16 MXU path (f32 accumulation / epilogue): looser check.
    fwd_bf16 = jax.jit(conv_layer_forward)
    out_bf16 = jax.block_until_ready(fwd_bf16(x, weight, gamma, beta, run_mean, run_var))
    assert out_bf16.shape == (N, C_out, H, W), out_bf16.shape
    assert jnp.allclose(out_bf16, ref, atol=6e-2, rtol=6e-2), "bf16 mismatch vs reference"

    print("KERNEL_OK")
</pallas_src>

<mosaic_0001>
module attributes {stable_mosaic.version = 11 : i64} {
  func.func @_conv_bn_act_kernel(%arg0: i32, %arg1: memref<1x4x512xf32, #tpu.memory_space<vmem>>, %arg2: memref<9x8x4xf32, #tpu.memory_space<vmem>>, %arg3: memref<8x1xf32, #tpu.memory_space<vmem>>, %arg4: memref<8x1xf32, #tpu.memory_space<vmem>>, %arg5: memref<1x8x384xf32, #tpu.memory_space<vmem>>) attributes {dimension_semantics = [#tpu.dimension_semantics<parallel>], iteration_bounds = array<i64: 2>, scalar_prefetch = 0 : i64, scratch_operands = 0 : i64, tpu.core_type = #tpu.core_type<tc>, window_params = [{transform_indices = @transform_0, window_bounds = array<i64: 1, 4, 512>}, {pipeline_mode = #tpu.pipeline_mode<synchronous>, transform_indices = @transform_1, window_bounds = array<i64: 9, 8, 4>}, {pipeline_mode = #tpu.pipeline_mode<synchronous>, transform_indices = @transform_2, window_bounds = array<i64: 8, 1>}, {pipeline_mode = #tpu.pipeline_mode<synchronous>, transform_indices = @transform_3, window_bounds = array<i64: 8, 1>}, {transform_indices = @transform_4, window_bounds = array<i64: 1, 8, 384>}]} {
    %c0 = arith.constant 0 : index
    %c0_0 = arith.constant 0 : index
    %0 = vector.load %arg3[%c0, %c0_0] : memref<8x1xf32, #tpu.memory_space<vmem>>, vector<8x1xf32>
    %c0_1 = arith.constant 0 : index
    %c0_2 = arith.constant 0 : index
    %1 = vector.load %arg4[%c0_1, %c0_2] : memref<8x1xf32, #tpu.memory_space<vmem>>, vector<8x1xf32>
    %cst = arith.constant 0.000000e+00 : f32
    %2 = vector.broadcast %cst : f32 to vector<8x384xf32>
    %c0_3 = arith.constant 0 : index
    %c0_4 = arith.constant 0 : index
    %c0_5 = arith.constant 0 : index
    %3 = vector.load %arg1[%c0_3, %c0_4, %c0_5] : memref<1x4x512xf32, #tpu.memory_space<vmem>>, vector<1x4x384xf32>
    %4 = vector.shape_cast %3 : vector<1x4x384xf32> to vector<4x384xf32>
    %c0_6 = arith.constant 0 : index
    %c0_7 = arith.constant 0 : index
    %c0_8 = arith.constant 0 : index
    %5 = vector.load %arg2[%c0_6, %c0_7, %c0_8] : memref<9x8x4xf32, #tpu.memory_space<vmem>>, vector<1x8x4xf32>
    %6 = vector.shape_cast %5 : vector<1x8x4xf32> to vector<8x4xf32>
    %cst_9 = arith.constant dense<0.000000e+00> : vector<8x384xf32>
    %7 = tpu.matmul %6, %4, %cst_9 {dimension_numbers = #tpu.dot_dimension_numbers<[1], [0], [0], [1], [0, 0, 1, 1], [], []>} : vector<8x4xf32>, vector<4x384xf32>, vector<8x384xf32> -> vector<8x384xf32>
    %8 = arith.addf %2, %7 : vector<8x384xf32>
    %c0_10 = arith.constant 0 : index
    %c0_11 = arith.constant 0 : index
    %c1 = arith.constant 1 : index
    %9 = vector.load %arg1[%c0_10, %c0_11, %c1] : memref<1x4x512xf32, #tpu.memory_space<vmem>>, vector<1x4x384xf32>
    %10 = vector.shape_cast %9 : vector<1x4x384xf32> to vector<4x384xf32>
    %c1_12 = arith.constant 1 : index
    %c0_13 = arith.constant 0 : index
    %c0_14 = arith.constant 0 : index
    %11 = vector.load %arg2[%c1_12, %c0_13, %c0_14] : memref<9x8x4xf32, #tpu.memory_space<vmem>>, vector<1x8x4xf32>
    %12 = vector.shape_cast %11 : vector<1x8x4xf32> to vector<8x4xf32>
    %cst_15 = arith.constant dense<0.000000e+00> : vector<8x384xf32>
    %13 = tpu.matmul %12, %10, %cst_15 {dimension_numbers = #tpu.dot_dimension_numbers<[1], [0], [0], [1], [0, 0, 1, 1], [], []>} : vector<8x4xf32>, vector<4x384xf32>, vector<8x384xf32> -> vector<8x384xf32>
    %14 = arith.addf %8, %13 : vector<8x384xf32>
    %c0_16 = arith.constant 0 : index
    %c0_17 = arith.constant 0 : index
    %c2 = arith.constant 2 : index
    %15 = vector.load %arg1[%c0_16, %c0_17, %c2] : memref<1x4x512xf32, #tpu.memory_space<vmem>>, vector<1x4x384xf32>
    %16 = vector.shape_cast %15 : vector<1x4x384xf32> to vector<4x384xf32>
    %c2_18 = arith.constant 2 : index
    %c0_19 = arith.constant 0 : index
    %c0_20 = arith.constant 0 : index
    %17 = vector.load %arg2[%c2_18, %c0_19, %c0_20] : memref<9x8x4xf32, #tpu.memory_space<vmem>>, vector<1x8x4xf32>
    %18 = vector.shape_cast %17 : vector<1x8x4xf32> to vector<8x4xf32>
    %cst_21 = arith.constant dense<0.000000e+00> : vector<8x384xf32>
    %19 = tpu.matmul %18, %16, %cst_21 {dimension_numbers = #tpu.dot_dimension_numbers<[1], [0], [0], [1], [0, 0, 1, 1], [], []>} : vector<8x4xf32>, vector<4x384xf32>, vector<8x384xf32> -> vector<8x384xf32>
    %20 = arith.addf %14, %19 : vector<8x384xf32>
    %c0_22 = arith.constant 0 : index
    %c0_23 = arith.constant 0 : index
    %c18 = arith.constant 18 : index
    %21 = vector.load %arg1[%c0_22, %c0_23, %c18] : memref<1x4x512xf32, #tpu.memory_space<vmem>>, vector<1x4x384xf32>
    %22 = vector.shape_cast %21 : vector<1x4x384xf32> to vector<4x384xf32>
    %c3 = arith.constant 3 : index
    %c0_24 = arith.constant 0 : index
    %c0_25 = arith.constant 0 : index
    %23 = vector.load %arg2[%c3, %c0_24, %c0_25] : memref<9x8x4xf32, #tpu.memory_space<vmem>>, vector<1x8x4xf32>
    %24 = vector.shape_cast %23 : vector<1x8x4xf32> to vector<8x4xf32>
    %cst_26 = arith.constant dense<0.000000e+00> : vector<8x384xf32>
    %25 = tpu.matmul %24, %22, %cst_26 {dimension_numbers = #tpu.dot_dimension_numbers<[1], [0], [0], [1], [0, 0, 1, 1], [], []>} : vector<8x4xf32>, vector<4x384xf32>, vector<8x384xf32> -> vector<8x384xf32>
    %26 = arith.addf %20, %25 : vector<8x384xf32>
    %c0_27 = arith.constant 0 : index
    %c0_28 = arith.constant 0 : index
    %c19 = arith.constant 19 : index
    %27 = vector.load %arg1[%c0_27, %c0_28, %c19] : memref<1x4x512xf32, #tpu.memory_space<vmem>>, vector<1x4x384xf32>
    %28 = vector.shape_cast %27 : vector<1x4x384xf32> to vector<4x384xf32>
    %c4 = arith.constant 4 : index
    %c0_29 = arith.constant 0 : index
    %c0_30 = arith.constant 0 : index
    %29 = vector.load %arg2[%c4, %c0_29, %c0_30] : memref<9x8x4xf32, #tpu.memory_space<vmem>>, vector<1x8x4xf32>
    %30 = vector.shape_cast %29 : vector<1x8x4xf32> to vector<8x4xf32>
    %cst_31 = arith.constant dense<0.000000e+00> : vector<8x384xf32>
    %31 = tpu.matmul %30, %28, %cst_31 {dimension_numbers = #tpu.dot_dimension_numbers<[1], [0], [0], [1], [0, 0, 1, 1], [], []>} : vector<8x4xf32>, vector<4x384xf32>, vector<8x384xf32> -> vector<8x384xf32>
    %32 = arith.addf %26, %31 : vector<8x384xf32>
    %c0_32 = arith.constant 0 : index
    %c0_33 = arith.constant 0 : index
    %c20 = arith.constant 20 : index
    %33 = vector.load %arg1[%c0_32, %c0_33, %c20] : memref<1x4x512xf32, #tpu.memory_space<vmem>>, vector<1x4x384xf32>
    %34 = vector.shape_cast %33 : vector<1x4x384xf32> to vector<4x384xf32>
    %c5 = arith.constant 5 : index
    %c0_34 = arith.constant 0 : index
    %c0_35 = arith.constant 0 : index
    %35 = vector.load %arg2[%c5, %c0_34, %c0_35] : memref<9x8x4xf32, #tpu.memory_space<vmem>>, vector<1x8x4xf32>
    %36 = vector.shape_cast %35 : vector<1x8x4xf32> to vector<8x4xf32>
    %cst_36 = arith.constant dense<0.000000e+00> : vector<8x384xf32>
    %37 = tpu.matmul %36, %34, %cst_36 {dimension_numbers = #tpu.dot_dimension_numbers<[1], [0], [0], [1], [0, 0, 1, 1], [], []>} : vector<8x4xf32>, vector<4x384xf32>, vector<8x384xf32> -> vector<8x384xf32>
    %38 = arith.addf %32, %37 : vector<8x384xf32>
    %c0_37 = arith.constant 0 : index
    %c0_38 = arith.constant 0 : index
    %c36 = arith.constant 36 : index
    %39 = vector.load %arg1[%c0_37, %c0_38, %c36] : memref<1x4x512xf32, #tpu.memory_space<vmem>>, vector<1x4x384xf32>
    %40 = vector.shape_cast %39 : vector<1x4x384xf32> to vector<4x384xf32>
    %c6 = arith.constant 6 : index
    %c0_39 = arith.constant 0 : index
    %c0_40 = arith.constant 0 : index
    %41 = vector.load %arg2[%c6, %c0_39, %c0_40] : memref<9x8x4xf32, #tpu.memory_space<vmem>>, vector<1x8x4xf32>
    %42 = vector.shape_cast %41 : vector<1x8x4xf32> to vector<8x4xf32>
    %cst_41 = arith.constant dense<0.000000e+00> : vector<8x384xf32>
    %43 = tpu.matmul %42, %40, %cst_41 {dimension_numbers = #tpu.dot_dimension_numbers<[1], [0], [0], [1], [0, 0, 1, 1], [], []>} : vector<8x4xf32>, vector<4x384xf32>, vector<8x384xf32> -> vector<8x384xf32>
    %44 = arith.addf %38, %43 : vector<8x384xf32>
    %c0_42 = arith.constant 0 : index
    %c0_43 = arith.constant 0 : index
    %c37 = arith.constant 37 : index
    %45 = vector.load %arg1[%c0_42, %c0_43, %c37] : memref<1x4x512xf32, #tpu.memory_space<vmem>>, vector<1x4x384xf32>
    %46 = vector.shape_cast %45 : vector<1x4x384xf32> to vector<4x384xf32>
    %c7 = arith.constant 7 : index
    %c0_44 = arith.constant 0 : index
    %c0_45 = arith.constant 0 : index
    %47 = vector.load %arg2[%c7, %c0_44, %c0_45] : memref<9x8x4xf32, #tpu.memory_space<vmem>>, vector<1x8x4xf32>
    %48 = vector.shape_cast %47 : vector<1x8x4xf32> to vector<8x4xf32>
    %cst_46 = arith.constant dense<0.000000e+00> : vector<8x384xf32>
    %49 = tpu.matmul %48, %46, %cst_46 {dimension_numbers = #tpu.dot_dimension_numbers<[1], [0], [0], [1], [0, 0, 1, 1], [], []>} : vector<8x4xf32>, vector<4x384xf32>, vector<8x384xf32> -> vector<8x384xf32>
    %50 = arith.addf %44, %49 : vector<8x384xf32>
    %c0_47 = arith.constant 0 : index
    %c0_48 = arith.constant 0 : index
    %c38 = arith.constant 38 : index
    %51 = vector.load %arg1[%c0_47, %c0_48, %c38] : memref<1x4x512xf32, #tpu.memory_space<vmem>>, vector<1x4x384xf32>
    %52 = vector.shape_cast %51 : vector<1x4x384xf32> to vector<4x384xf32>
    %c8 = arith.constant 8 : index
    %c0_49 = arith.constant 0 : index
    %c0_50 = arith.constant 0 : index
    %53 = vector.load %arg2[%c8, %c0_49, %c0_50] : memref<9x8x4xf32, #tpu.memory_space<vmem>>, vector<1x8x4xf32>
    %54 = vector.shape_cast %53 : vector<1x8x4xf32> to vector<8x4xf32>
    %cst_51 = arith.constant dense<0.000000e+00> : vector<8x384xf32>
    %55 = tpu.matmul %54, %52, %cst_51 {dimension_numbers = #tpu.dot_dimension_numbers<[1], [0], [0], [1], [0, 0, 1, 1], [], []>} : vector<8x4xf32>, vector<4x384xf32>, vector<8x384xf32> -> vector<8x384xf32>
    %56 = arith.addf %50, %55 : vector<8x384xf32>
    %57 = vector.broadcast %0 : vector<8x1xf32> to vector<8x384xf32>
    %58 = arith.mulf %56, %57 : vector<8x384xf32>
    %59 = vector.broadcast %1 : vector<8x1xf32> to vector<8x384xf32>
    %60 = arith.addf %58, %59 : vector<8x384xf32>
    %61 = arith.negf %60 : vector<8x384xf32>
    %62 = math.exp %61 : vector<8x384xf32>
    %cst_52 = arith.constant 1.000000e+00 : f32
    %63 = vector.broadcast %cst_52 : f32 to vector<8x384xf32>
    %64 = arith.addf %63, %62 : vector<8x384xf32>
    %65 = arith.divf %63, %64 : vector<8x384xf32>
    %66 = arith.mulf %60, %65 : vector<8x384xf32>
    %c0_53 = arith.constant 0 : index
    %c0_54 = arith.constant 0 : index
    %c0_55 = arith.constant 0 : index
    %67 = vector.load %arg5[%c0_53, %c0_54, %c0_55] : memref<1x8x384xf32, #tpu.memory_space<vmem>>, vector<1x8x384xf32>
    %68 = vector.shape_cast %67 : vector<1x8x384xf32> to vector<8x384xf32>
    %69 = vector.shape_cast %66 : vector<8x384xf32> to vector<1x8x384xf32>
    tpu.vector_store %arg5[%c0_53, %c0_54, %c0_55], %69 {strides = array<i32>} : memref<1x8x384xf32, #tpu.memory_space<vmem>>, vector<1x8x384xf32>,
    return
  }
  func.func @transform_0(%arg0: i32) -> (i32, i32, i32) {
    %c0_i32 = arith.constant 0 : i32
    %c0_i32_0 = arith.constant 0 : i32
    %c0_i32_1 = arith.constant 0 : i32
    return %arg0, %c0_i32, %c0_i32_0 : i32, i32, i32
  }
  func.func @transform_1(%arg0: i32) -> (i32, i32, i32) {
    %c0_i32 = arith.constant 0 : i32
    %c0_i32_0 = arith.constant 0 : i32
    %c0_i32_1 = arith.constant 0 : i32
    %c0_i32_2 = arith.constant 0 : i32
    return %c0_i32, %c0_i32_0, %c0_i32_1 : i32, i32, i32
  }
  func.func @transform_2(%arg0: i32) -> (i32, i32) {
    %c0_i32 = arith.constant 0 : i32
    %c0_i32_0 = arith.constant 0 : i32
    %c0_i32_1 = arith.constant 0 : i32
    return %c0_i32, %c0_i32_0 : i32, i32
  }
  func.func @transform_3(%arg0: i32) -> (i32, i32) {
    %c0_i32 = arith.constant 0 : i32
    %c0_i32_0 = arith.constant 0 : i32
    %c0_i32_1 = arith.constant 0 : i32
    return %c0_i32, %c0_i32_0 : i32, i32
  }
  func.func @transform_4(%arg0: i32) -> (i32, i32, i32) {
    %c0_i32 = arith.constant 0 : i32
    %c0_i32_0 = arith.constant 0 : i32
    %c0_i32_1 = arith.constant 0 : i32
    return %arg0, %c0_i32, %c0_i32_0 : i32, i32, i32
  }
}

</mosaic_0001>

<llo_original>
// kernel: conv_layer_forward.1
$region0: #{conv_layer_forward.1}
  #allocation0 [shape = 'u32[]', space=smem, size = 0x4, offset = 0x4, fixed_abs, tag = 'smem constant byte address 0x4 - core index']
  #allocation1 [shape = 'u32[72,128]{1,0:T(1,128)}', space=vmem, size = 0x9000, scoped, tag = 'internal scratch']
  %s0 = inlined_call_operand.vmem [shape: f32[2,4,512], index: 0, kind: input, shape index: {}]
  %s1 = inlined_call_operand.vmem [shape: f32[9,8,4], index: 1, kind: input, shape index: {}]
  %s2 = inlined_call_operand.vmem [shape: f32[8,1], index: 2, kind: input, shape index: {}]
  %s3 = inlined_call_operand.vmem [shape: f32[8,1], index: 3, kind: input, shape index: {}]
  %s4 = inlined_call_operand.vmem [shape: f32[2,8,384], index: 4, kind: output, shape index: {}]
  %s5 = sld [smem:[#allocation0]]
  $region49: #{conv_layer_forward.1} parent=0
    _
  %s7 = ssub.s32 1, %s5
  %s8 = scalar_select 0, %s7, %s5
  loop: start=0, step=1, limit=4
  $region2: #{conv_layer_forward.1} parent=0 // loop_pre_header
    _
  $region3: #{conv_layer_forward.1} parent=0 // loop_header
    %s10 = sphi 0, %s14
    %p11 = scmp.ge.s32.totalorder %s10, 4
    %s20 = sphi 0, %s22
    %s23 = sphi 0, %s20
    %s24 = sphi 0, %s23
    %s40 = sphi 0, %s24
    %s44 = sphi 0, %s44
    %s46 = sphi 0, %s44
    %s47 = sphi 0, %s46
    %s61 = sphi 0, %s47
    %s65 = sphi 0, %s65
    %s67 = sphi 0, %s65
    %s68 = sphi 0, %s67
    %s82 = sphi 0, %s68
    %s86 = sphi 0, %s86
    %s88 = sphi 0, %s86
    %s89 = sphi 0, %s88
    %s103 = sphi 0, %s89
    %s109 = sphi 0, %s111
    %s112 = sphi 0, %s109
    %s113 = sphi 0, %s112
    %s129 = sphi 0, %s113
  $region4: #{conv_layer_forward.1} parent=0 // loop_header_branch
    %13 = sbr.rel (%p11) target = $region8
  $region5: #{conv_layer_forward.1} parent=0 // loop_body
    %s15 = ssub.s32 %s10, 1
    %s16 = ssub.s32 %s10, 2
    %s17 = sadd.s32 %s10, 1
    %s18 = ssub.s32 %s10, %s17
    %p19 = scmp.eq.s32.totalorder %s18, 0
    %s21 = sadd.s32 %s20, 1
    %s22 = scalar_select %p19, %s20, %s21
    %p25 = pneg %p19
    %p26 = scmp.eq.s32.totalorder %s10, 1
    %p27 = por %p25, %p26
    %p28 = scmp.ne.s32.totalorder %s20, %s23
    %p29 = scmp.eq.s32.totalorder %s10, 0
    %p30 = por %p28, %p29
    %p31 = scmp.ne.s32.totalorder %s20, %s23
    %p32 = scmp.eq.s32.totalorder %s15, 1
    %p33 = por %p31, %p32
    %p34 = scmp.ne.s32.totalorder %s23, %s24
    %p35 = scmp.eq.s32.totalorder %s15, 0
    %p36 = por %p34, %p35
    %p37 = scmp.ne.s32.totalorder %s23, %s24
    %p38 = scmp.eq.s32.totalorder %s16, 1
    %p39 = por %p37, %p38
    %p41 = scmp.ne.s32.totalorder %s24, %s40
    %p42 = scmp.eq.s32.totalorder %s16, 0
    %p43 = por %p41, %p42
    %s45 = sadd.s32 %s44, 1
    %p48 = scmp.eq.s32.totalorder %s10, 1
    %p49 = scmp.ne.s32.totalorder %s44, %s46
    %p50 = scmp.eq.s32.totalorder %s10, 0
    %p51 = por %p49, %p50
    %p52 = scmp.ne.s32.totalorder %s44, %s46
    %p53 = scmp.eq.s32.totalorder %s15, 1
    %p54 = por %p52, %p53
    %p55 = scmp.ne.s32.totalorder %s46, %s47
    %p56 = scmp.eq.s32.totalorder %s15, 0
    %p57 = por %p55, %p56
    %p58 = scmp.ne.s32.totalorder %s46, %s47
    %p59 = scmp.eq.s32.totalorder %s16, 1
    %p60 = por %p58, %p59
    %p62 = scmp.ne.s32.totalorder %s47, %s61
    %p63 = scmp.eq.s32.totalorder %s16, 0
    %p64 = por %p62, %p63
    %s66 = sadd.s32 %s65, 1
    %p69 = scmp.eq.s32.totalorder %s10, 1
    %p70 = scmp.ne.s32.totalorder %s65, %s67
    %p71 = scmp.eq.s32.totalorder %s10, 0
    %p72 = por %p70, %p71
    %p73 = scmp.ne.s32.totalorder %s65, %s67
    %p74 = scmp.eq.s32.totalorder %s15, 1
    %p75 = por %p73, %p74
    %p76 = scmp.ne.s32.totalorder %s67, %s68
    %p77 = scmp.eq.s32.totalorder %s15, 0
    %p78 = por %p76, %p77
    %p79 = scmp.ne.s32.totalorder %s67, %s68
    %p80 = scmp.eq.s32.totalorder %s16, 1
    %p81 = por %p79, %p80
    %p83 = scmp.ne.s32.totalorder %s68, %s82
    %p84 = scmp.eq.s32.totalorder %s16, 0
    %p85 = por %p83, %p84
    %s87 = sadd.s32 %s86, 1
    %p90 = scmp.eq.s32.totalorder %s10, 1
    %p91 = scmp.ne.s32.totalorder %s86, %s88
    %p92 = scmp.eq.s32.totalorder %s10, 0
    %p93 = por %p91, %p92
    %p94 = scmp.ne.s32.totalorder %s86, %s88
    %p95 = scmp.eq.s32.totalorder %s15, 1
    %p96 = por %p94, %p95
    %p97 = scmp.ne.s32.totalorder %s88, %s89
    %p98 = scmp.eq.s32.totalorder %s15, 0
    %p99 = por %p97, %p98
    %p100 = scmp.ne.s32.totalorder %s88, %s89
    %p101 = scmp.eq.s32.totalorder %s16, 1
    %p102 = por %p100, %p101
    %p104 = scmp.ne.s32.totalorder %s89, %s103
    %p105 = scmp.eq.s32.totalorder %s16, 0
    %p106 = por %p104, %p105
    %s107 = ssub.s32 %s10, %s17
    %p108 = scmp.eq.s32.totalorder %s107, 0
    %s110 = sadd.s32 %s109, 1
    %s111 = scalar_select %p108, %s109, %s110
    %p114 = pneg %p108
    %p115 = scmp.eq.s32.totalorder %s10, 1
    %p116 = por %p114, %p115
    %p117 = scmp.ne.s32.totalorder %s109, %s112
    %p118 = scmp.eq.s32.totalorder %s10, 0
    %p119 = por %p117, %p118
    %p120 = scmp.ne.s32.totalorder %s109, %s112
    %p121 = scmp.eq.s32.totalorder %s15, 1
    %p122 = por %p120, %p121
    %p123 = scmp.ne.s32.totalorder %s112, %s113
    %p124 = scmp.eq.s32.totalorder %s15, 0
    %p125 = por %p123, %p124
    %p126 = scmp.ne.s32.totalorder %s112, %s113
    %p127 = scmp.eq.s32.totalorder %s16, 1
    %p128 = por %p126, %p127
    %p130 = scmp.ne.s32.totalorder %s113, %s129
    %p131 = scmp.eq.s32.totalorder %s16, 0
    %p132 = por %p130, %p131
    %p133 = scmp.le.s32.totalorder 1, %s10
    %p134 = scmp.lt.s32.totalorder %s10, 3
    %p135 = pnand %p133, %p134
    %p136 = pneg %p135
    // Predicated region
    $region9: #{conv_layer_forward.1} parent=5 // pred_check
      _
    $region10: #{conv_layer_forward.1} parent=5 // pred_check_branch
      %138 = sbr.rel (%p135) target = $region12
    $region11: #{conv_layer_forward.1} parent=5 // pred_region
      %s139 = ssub.s32 %s10, 1
      // Predicated region
      $region13: #{conv_layer_forward.1} parent=11 // pred_check
        %p140 = pneg %p57
      $region14: #{conv_layer_forward.1} parent=11 // pred_check_branch
        %142 = sbr.rel (%p140) target = $region16
      $region15: #{conv_layer_forward.1} parent=11 // pred_region
        _
      $region16: #{conv_layer_forward.1} parent=11 // pred_fallthru
        _
      // Predicated region
      $region17: #{conv_layer_forward.1} parent=11 // pred_check
        %p143 = pneg %p78
      $region18: #{conv_layer_forward.1} parent=11 // pred_check_branch
        %145 = sbr.rel (%p143) target = $region20
      $region19: #{conv_layer_forward.1} parent=11 // pred_region
        _
      $region20: #{conv_layer_forward.1} parent=11 // pred_fallthru
        _
      // Predicated region
      $region21: #{conv_layer_forward.1} parent=11 // pred_check
        %p146 = pneg %p99
      $region22: #{conv_layer_forward.1} parent=11 // pred_check_branch
        %148 = sbr.rel (%p146) target = $region24
      $region23: #{conv_layer_forward.1} parent=11 // pred_region
        _
      $region24: #{conv_layer_forward.1} parent=11 // pred_fallthru
        _
    $region12: #{conv_layer_forward.1} parent=5 // pred_fallthru
      _
    %p149 = scmp.lt.s32.totalorder %s10, 2
    // Predicated region
    $region25: #{conv_layer_forward.1} parent=5 // pred_check
      %p150 = pneg %p149
    $region26: #{conv_layer_forward.1} parent=5 // pred_check_branch
      %152 = sbr.rel (%p150) target = $region28
    $region27: #{conv_layer_forward.1} parent=5 // pred_region
      // Predicated region
      $region29: #{conv_layer_forward.1} parent=27 // pred_check
        %p153 = pneg %p30
      $region30: #{conv_layer_forward.1} parent=27 // pred_check_branch
        %155 = sbr.rel (%p153) target = $region32
      $region31: #{conv_layer_forward.1} parent=27 // pred_region
        %p156 = scmp.lt.s32.totalorder %s10, 1
        %s157 = scalar_select %p156, %s10, 1
        %s158 = smul.addr %s157, 4
        %s159 = smul.addr %s158, 4
        %s160 = scalar_lea.vmem %s0, %s159
      $region32: #{conv_layer_forward.1} parent=27 // pred_fallthru
        _
    $region28: #{conv_layer_forward.1} parent=5 // pred_fallthru
      _
    %p161 = scmp.le.s32.totalorder 1, %s10
    %p162 = scmp.lt.s32.totalorder %s10, 3
    %p163 = pnand %p161, %p162
    %p164 = pneg %p163
    // Predicated region
    $region33: #{conv_layer_forward.1} parent=5 // pred_check
      _
    $region34: #{conv_layer_forward.1} parent=5 // pred_check_branch
      %166 = sbr.rel (%p163) target = $region36
    $region35: #{conv_layer_forward.1} parent=5 // pred_region
      %s167 = ssub.s32 %s10, 1
      %p168 = scmp.lt.s32.totalorder %s15, 1
      %s169 = scalar_select %p168, %s15, 1
      %s170 = smul.addr %s169, 4
      %s171 = smul.addr %s170, 4
      %s172 = scalar_lea.vmem %s0, %s171
      %p173 = pneg %p36
      %p174 = pneg %p33
      %p175 = pneg %p57
      %p176 = pneg %p54
      %p177 = pneg %p78
      %p178 = pneg %p75
      %p179 = pneg %p99
      %p180 = pneg %p96
      %p181 = pneg %p125
      %p182 = pneg %p122
      %p183 = scmp.lt.s32.totalorder %s15, 1
      %s184 = scalar_select %p183, %s15, 1
      %s185 = smul.addr %s184, 3
      %s186 = smul.addr %s185, 8
      %s187 = scalar_lea.vmem %s4, %s186
      %p188 = scmp.lt.s32.totalorder %s15, 1
      %s189 = scalar_select %p188, %s15, 1
      %s190 = smul.addr %s189, 4
      %s191 = smul.addr %s190, 4
      %s192 = scalar_lea.vmem %s0, %s191
      %p193 = scmp.lt.s32.totalorder %s15, 1
      %s194 = scalar_select %p193, %s15, 1
      %s195 = smul.addr %s194, 3
      %s196 = smul.addr %s195, 8
      %s197 = scalar_lea.vmem %s4, %s196
      %v198 = vld [vmem:[%s2] sm:$0xff]
      %v199 = vld [vmem:[%s3] sm:$0xff]
      %v200 = vld [vmem:[%s192] sm:$0xff]
      %v201 = vld [vmem:[%s192 + $0x8] sm:$0xf]
      %v202 = vld [vmem:[%s1] sm:$0xff]
      %v203 = vld [vmem:[%s192] sm:$0xff]
      %v204 = vld [vmem:[%s192 + $0x8] sm:$0xff]
      %s205 = scalar_lea.vmem %s1, 8
      %v206 = vld [vmem:[%s205] sm:$0xff]
      %209 = vst [vmem:[#allocation1] ss:$2 sm:$0xff] %v203
      %s210 = scalar_lea.vmem [#allocation1], 16
      %211 = vst [vmem:[%s210] ss:$2 sm:$0xff] %v204
      %v212 = vld.sshfl [vmem:[#allocation1] sm:$0xff pattern:$0x75316420]
      %v213 = vld.sshfl [vmem:[#allocation1 + $0x8] sm:$0xff pattern:$0x75316420]
      %v214 = vld.sshfl [vmem:[#allocation1 + $0x10] sm:$0xff pattern:$0x75316420]
      %v215 = vld.sshfl [vmem:[#allocation1 + $0x18] sm:$0xff pattern:$0x75316420]
      %216 = vrot.lane.b32.xlu0 %v212, 127
      %v217 = vpop.permute.xlu0 %216
      %218 = vrot.lane.b32.xlu0 %v213, 127
      %v219 = vpop.permute.xlu0 %218
      %220 = vrot.lane.b32.xlu0 %v214, 127
      %v221 = vpop.permute.xlu0 %220
      %222 = vrot.lane.b32.xlu0 %v215, 127
      %v223 = vpop.permute.xlu0 %222
      %vm224 = vcmask 1039360
      %v225 = vsel %vm224, %v217, %v219
      %v226 = vsel %vm224, %v219, %v221
      %v227 = vsel %vm224, %v221, %v223
      %vm228 = vcmask 31744
      %v230 = vsel %vm228, %v206, 0
      %vm232 = vcmask 1043456
      %v233 = vsel %vm232, %v225, 0
      %v235 = vsel %vm232, %v226, 0
      %v237 = vsel %vm232, %v227, 0
      %239 = vmatpush.msra.mxu0 0.0
      %240 = vmatpush.msra.mxu0 0.0
      %241 = vmatpush.msra.mxu0 0.0
      %242 = vmatpush.msra.mxu0 0.0
      %243 = vmatpush.msra.mxu0 0.0
      %244 = vmatpush.msra.mxu0 0.0
      %245 = vmatpush.msra.mxu0 0.0
      %246 = vmatpush.msra.mxu0 0.0
      %247 = vmatpush.msra.mxu0 0.0
      %248 = vmatpush.msra.mxu0 0.0
      %249 = vmatpush.msra.mxu0 0.0
      %250 = vmatpush.msra.mxu0 0.0
      %251 = vmatpush.msra.mxu0 0.0
      %252 = vmatpush.msra.mxu0 0.0
      %253 = vmatpush.msra.mxu0 0.0
      %254 = vmatpush.msra.mxu0 %v233
      %255 = vmatmul.f32.gmra.mxu0 %v230
      %v256 = vpop.f32.mrf.mxu0
      %v257 = vadd.f32 0.0, %v256
      %258 = vdwg.mxu0
      %259 = vmatpush.msra.mxu0 0.0
      %260 = vmatpush.msra.mxu0 0.0
      %261 = vmatpush.msra.mxu0 0.0
      %262 = vmatpush.msra.mxu0 0.0
      %263 = vmatpush.msra.mxu0 0.0
      %264 = vmatpush.msra.mxu0 0.0
      %265 = vmatpush.msra.mxu0 0.0
      %266 = vmatpush.msra.mxu0 0.0
      %267 = vmatpush.msra.mxu0 0.0
      %268 = vmatpush.msra.mxu0 0.0
      %269 = vmatpush.msra.mxu0 0.0
      %270 = vmatpush.msra.mxu0 0.0
      %271 = vmatpush.msra.mxu0 0.0
      %272 = vmatpush.msra.mxu0 0.0
      %273 = vmatpush.msra.mxu0 0.0
      %274 = vmatpush.msra.mxu0 %v235
      %275 = vmatmul.f32.gmra.mxu0 %v230
      %v276 = vpop.f32.mrf.mxu0
      %v277 = vadd.f32 0.0, %v276
      %278 = vdwg.mxu0
      %279 = vmatpush.msra.mxu0 0.0
      %280 = vmatpush.msra.mxu0 0.0
      %281 = vmatpush.msra.mxu0 0.0
      %282 = vmatpush.msra.mxu0 0.0
      %283 = vmatpush.msra.mxu0 0.0
      %284 = vmatpush.msra.mxu0 0.0
      %285 = vmatpush.msra.mxu0 0.0
      %286 = vmatpush.msra.mxu0 0.0
      %287 = vmatpush.msra.mxu0 0.0
      %288 = vmatpush.msra.mxu0 0.0
      %289 = vmatpush.msra.mxu0 0.0
      %290 = vmatpush.msra.mxu0 0.0
      %291 = vmatpush.msra.mxu0 0.0
      %292 = vmatpush.msra.mxu0 0.0
      %293 = vmatpush.msra.mxu0 0.0
      %294 = vmatpush.msra.mxu0 %v237
      %295 = vmatmul.f32.gmra.mxu0 %v230
      %v296 = vpop.f32.mrf.mxu0
      %v297 = vadd.f32 0.0, %v296
      %298 = vdwg.mxu0
      %301 = vst [vmem:[#allocation1] ss:$2 sm:$0xff] %v200
      %s302 = scalar_lea.vmem [#allocation1], 16
      %303 = vst [vmem:[%s302] ss:$2 sm:$0xff] %v201
      %v304 = vld.sshfl [vmem:[#allocation1] sm:$0xff pattern:$0x75316420]
      %v305 = vld.sshfl [vmem:[#allocation1 + $0x8] sm:$0xff pattern:$0x75316420]
      %v306 = vld.sshfl [vmem:[#allocation1 + $0x10] sm:$0xff pattern:$0x75316420]
      %v308 = vsel %vm228, %v202, 0
      %v310 = vsel %vm232, %v304, 0
      %v312 = vsel %vm232, %v305, 0
      %v314 = vsel %vm232, %v306, 0
      %316 = vmatpush.msra.mxu0 0.0
      %317 = vmatpush.msra.mxu0 0.0
      %318 = vmatpush.msra.mxu0 0.0
      %319 = vmatpush.msra.mxu0 0.0
      %320 = vmatpush.msra.mxu0 0.0
      %321 = vmatpush.msra.mxu0 0.0
      %322 = vmatpush.msra.mxu0 0.0
      %323 = vmatpush.msra.mxu0 0.0
      %324 = vmatpush.msra.mxu0 0.0
      %325 = vmatpush.msra.mxu0 0.0
      %326 = vmatpush.msra.mxu0 0.0
      %327 = vmatpush.msra.mxu0 0.0
      %328 = vmatpush.msra.mxu0 0.0
      %329 = vmatpush.msra.mxu0 0.0
      %330 = vmatpush.msra.mxu0 0.0
      %331 = vmatpush.msra.mxu0 %v310
      %332 = vmatmul.f32.gmra.mxu0 %v308
      %v333 = vpop.f32.mrf.mxu0
      %v334 = vadd.f32 %v257, %v333
      %335 = vdwg.mxu0
      %336 = vmatpush.msra.mxu0 0.0
      %337 = vmatpush.msra.mxu0 0.0
      %338 = vmatpush.msra.mxu0 0.0
      %339 = vmatpush.msra.mxu0 0.0
      %340 = vmatpush.msra.mxu0 0.0
      %341 = vmatpush.msra.mxu0 0.0
      %342 = vmatpush.msra.mxu0 0.0
      %343 = vmatpush.msra.mxu0 0.0
      %344 = vmatpush.msra.mxu0 0.0
      %345 = vmatpush.msra.mxu0 0.0
      %346 = vmatpush.msra.mxu0 0.0
      %347 = vmatpush.msra.mxu0 0.0
      %348 = vmatpush.msra.mxu0 0.0
      %349 = vmatpush.msra.mxu0 0.0
      %350 = vmatpush.msra.mxu0 0.0
      %351 = vmatpush.msra.mxu0 %v312
      %352 = vmatmul.f32.gmra.mxu0 %v308
      %v353 = vpop.f32.mrf.mxu0
      %v354 = vadd.f32 %v277, %v353
      %355 = vdwg.mxu0
      %356 = vmatpush.msra.mxu0 0.0
      %357 = vmatpush.msra.mxu0 0.0
      %358 = vmatpush.msra.mxu0 0.0
      %359 = vmatpush.msra.mxu0 0.0
      %360 = vmatpush.msra.mxu0 0.0
      %361 = vmatpush.msra.mxu0 0.0
      %362 = vmatpush.msra.mxu0 0.0
      %363 = vmatpush.msra.mxu0 0.0
      %364 = vmatpush.msra.mxu0 0.0
      %365 = vmatpush.msra.mxu0 0.0
      %366 = vmatpush.msra.mxu0 0.0
      %367 = vmatpush.msra.mxu0 0.0
      %368 = vmatpush.msra.mxu0 0.0
      %369 = vmatpush.msra.mxu0 0.0
      %370 = vmatpush.msra.mxu0 0.0
      %371 = vmatpush.msra.mxu0 %v314
      %372 = vmatmul.f32.gmra.mxu0 %v308
      %v373 = vpop.f32.mrf.mxu0
      %v374 = vadd.f32 %v297, %v373
      %375 = vdwg.mxu0
      %v376 = vld [vmem:[%s192] sm:$0xff]
      %v377 = vld [vmem:[%s192 + $0x8] sm:$0xff]
      %s378 = scalar_lea.vmem %s1, 16
      %v379 = vld [vmem:[%s378] sm:$0xff]
      %382 = vst [vmem:[#allocation1] ss:$2 sm:$0xff] %v376
      %s383 = scalar_lea.vmem [#allocation1], 16
      %384 = vst [vmem:[%s383] ss:$2 sm:$0xff] %v377
      %v385 = vld.sshfl [vmem:[#allocation1] sm:$0xff pattern:$0x75316420]
      %v386 = vld.sshfl [vmem:[#allocation1 + $0x8] sm:$0xff pattern:$0x75316420]
      %v387 = vld.sshfl [vmem:[#allocation1 + $0x10] sm:$0xff pattern:$0x75316420]
      %v388 = vld.sshfl [vmem:[#allocation1 + $0x18] sm:$0xff pattern:$0x75316420]
      %389 = vrot.lane.b32.xlu0 %v385, 126
      %v390 = vpop.permute.xlu0 %389
      %391 = vrot.lane.b32.xlu0 %v386, 126
      %v392 = vpop.permute.xlu0 %391
      %393 = vrot.lane.b32.xlu0 %v387, 126
      %v394 = vpop.permute.xlu0 %393
      %395 = vrot.lane.b32.xlu0 %v388, 126
      %v396 = vpop.permute.xlu0 %395
      %vm397 = vcmask 1031168
      %v398 = vsel %vm397, %v390, %v392
      %v399 = vsel %vm397, %v392, %v394
      %v400 = vsel %vm397, %v394, %v396
      %v402 = vsel %vm228, %v379, 0
      %v404 = vsel %vm232, %v398, 0
      %v406 = vsel %vm232, %v399, 0
      %v408 = vsel %vm232, %v400, 0
      %410 = vmatpush.msra.mxu0 0.0
      %411 = vmatpush.msra.mxu0 0.0
      %412 = vmatpush.msra.mxu0 0.0
      %413 = vmatpush.msra.mxu0 0.0
      %414 = vmatpush.msra.mxu0 0.0
      %415 = vmatpush.msra.mxu0 0.0
      %416 = vmatpush.msra.mxu0 0.0
      %417 = vmatpush.msra.mxu0 0.0
      %418 = vmatpush.msra.mxu0 0.0
      %419 = vmatpush.msra.mxu0 0.0
      %420 = vmatpush.msra.mxu0 0.0
      %421 = vmatpush.msra.mxu0 0.0
      %422 = vmatpush.msra.mxu0 0.0
      %423 = vmatpush.msra.mxu0 0.0
      %424 = vmatpush.msra.mxu0 0.0
      %425 = vmatpush.msra.mxu0 %v404
      %426 = vmatmul.f32.gmra.mxu0 %v402
      %v427 = vpop.f32.mrf.mxu0
      %v428 = vadd.f32 0.0, %v427
      %429 = vdwg.mxu0
      %430 = vmatpush.msra.mxu0 0.0
      %431 = vmatpush.msra.mxu0 0.0
      %432 = vmatpush.msra.mxu0 0.0
      %433 = vmatpush.msra.mxu0 0.0
      %434 = vmatpush.msra.mxu0 0.0
      %435 = vmatpush.msra.mxu0 0.0
      %436 = vmatpush.msra.mxu0 0.0
      %437 = vmatpush.msra.mxu0 0.0
      %438 = vmatpush.msra.mxu0 0.0
      %439 = vmatpush.msra.mxu0 0.0
      %440 = vmatpush.msra.mxu0 0.0
      %441 = vmatpush.msra.mxu0 0.0
      %442 = vmatpush.msra.mxu0 0.0
      %443 = vmatpush.msra.mxu0 0.0
      %444 = vmatpush.msra.mxu0 0.0
      %445 = vmatpush.msra.mxu0 %v406
      %446 = vmatmul.f32.gmra.mxu0 %v402
      %v447 = vpop.f32.mrf.mxu0
      %v448 = vadd.f32 0.0, %v447
      %449 = vdwg.mxu0
      %450 = vmatpush.msra.mxu0 0.0
      %451 = vmatpush.msra.mxu0 0.0
      %452 = vmatpush.msra.mxu0 0.0
      %453 = vmatpush.msra.mxu0 0.0
      %454 = vmatpush.msra.mxu0 0.0
      %455 = vmatpush.msra.mxu0 0.0
      %456 = vmatpush.msra.mxu0 0.0
      %457 = vmatpush.msra.mxu0 0.0
      %458 = vmatpush.msra.mxu0 0.0
      %459 = vmatpush.msra.mxu0 0.0
      %460 = vmatpush.msra.mxu0 0.0
      %461 = vmatpush.msra.mxu0 0.0
      %462 = vmatpush.msra.mxu0 0.0
      %463 = vmatpush.msra.mxu0 0.0
      %464 = vmatpush.msra.mxu0 0.0
      %465 = vmatpush.msra.mxu0 %v408
      %466 = vmatmul.f32.gmra.mxu0 %v402
      %v467 = vpop.f32.mrf.mxu0
      %v468 = vadd.f32 0.0, %v467
      %469 = vdwg.mxu0
      %v470 = vadd.f32 %v334, %v428
      %v471 = vadd.f32 %v354, %v448
      %v472 = vadd.f32 %v374, %v468
      %v473 = vld [vmem:[%s192] sm:$0xff]
      %v474 = vld [vmem:[%s192 + $0x8] sm:$0xff]
      %s475 = scalar_lea.vmem %s1, 24
      %v476 = vld [vmem:[%s475] sm:$0xff]
      %479 = vst [vmem:[#allocation1] ss:$2 sm:$0xff] %v473
      %s480 = scalar_lea.vmem [#allocation1], 16
      %481 = vst [vmem:[%s480] ss:$2 sm:$0xff] %v474
      %v482 = vld.sshfl [vmem:[#allocation1] sm:$0xff pattern:$0x75316420]
      %v483 = vld.sshfl [vmem:[#allocation1 + $0x8] sm:$0xff pattern:$0x75316420]
      %v484 = vld.sshfl [vmem:[#allocation1 + $0x10] sm:$0xff pattern:$0x75316420]
      %v485 = vld.sshfl [vmem:[#allocation1 + $0x18] sm:$0xff pattern:$0x75316420]
      %486 = vrot.lane.b32.xlu0 %v482, 110
      %v487 = vpop.permute.xlu0 %486
      %488 = vrot.lane.b32.xlu0 %v483, 110
      %v489 = vpop.permute.xlu0 %488
      %490 = vrot.lane.b32.xlu0 %v484, 110
      %v491 = vpop.permute.xlu0 %490
      %492 = vrot.lane.b32.xlu0 %v485, 110
      %v493 = vpop.permute.xlu0 %492
      %vm494 = vcmask 900096
      %v495 = vsel %vm494, %v487, %v489
      %v496 = vsel %vm494, %v489, %v491
      %v497 = vsel %vm494, %v491, %v493
      %v499 = vsel %vm228, %v476, 0
      %v501 = vsel %vm232, %v495, 0
      %v503 = vsel %vm232, %v496, 0
      %v505 = vsel %vm232, %v497, 0
      %507 = vmatpush.msra.mxu0 0.0
      %508 = vmatpush.msra.mxu0 0.0
      %509 = vmatpush.msra.mxu0 0.0
      %510 = vmatpush.msra.mxu0 0.0
      %511 = vmatpush.msra.mxu0 0.0
      %512 = vmatpush.msra.mxu0 0.0
      %513 = vmatpush.msra.mxu0 0.0
      %514 = vmatpush.msra.mxu0 0.0
      %515 = vmatpush.msra.mxu0 0.0
      %516 = vmatpush.msra.mxu0 0.0
      %517 = vmatpush.msra.mxu0 0.0
      %518 = vmatpush.msra.mxu0 0.0
      %519 = vmatpush.msra.mxu0 0.0
      %520 = vmatpush.msra.mxu0 0.0
      %521 = vmatpush.msra.mxu0 0.0
      %522 = vmatpush.msra.mxu0 %v501
      %523 = vmatmul.f32.gmra.mxu0 %v499
      %v524 = vpop.f32.mrf.mxu0
      %v525 = vadd.f32 0.0, %v524
      %526 = vdwg.mxu0
      %527 = vmatpush.msra.mxu0 0.0
      %528 = vmatpush.msra.mxu0 0.0
      %529 = vmatpush.msra.mxu0 0.0
      %530 = vmatpush.msra.mxu0 0.0
      %531 = vmatpush.msra.mxu0 0.0
      %532 = vmatpush.msra.mxu0 0.0
      %533 = vmatpush.msra.mxu0 0.0
      %534 = vmatpush.msra.mxu0 0.0
      %535 = vmatpush.msra.mxu0 0.0
      %536 = vmatpush.msra.mxu0 0.0
      %537 = vmatpush.msra.mxu0 0.0
      %538 = vmatpush.msra.mxu0 0.0
      %539 = vmatpush.msra.mxu0 0.0
      %540 = vmatpush.msra.mxu0 0.0
      %541 = vmatpush.msra.mxu0 0.0
      %542 = vmatpush.msra.mxu0 %v503
      %543 = vmatmul.f32.gmra.mxu0 %v499
      %v544 = vpop.f32.mrf.mxu0
      %v545 = vadd.f32 0.0, %v544
      %546 = vdwg.mxu0
      %547 = vmatpush.msra.mxu0 0.0
      %548 = vmatpush.msra.mxu0 0.0
      %549 = vmatpush.msra.mxu0 0.0
      %550 = vmatpush.msra.mxu0 0.0
      %551 = vmatpush.msra.mxu0 0.0
      %552 = vmatpush.msra.mxu0 0.0
      %553 = vmatpush.msra.mxu0 0.0
      %554 = vmatpush.msra.mxu0 0.0
      %555 = vmatpush.msra.mxu0 0.0
      %556 = vmatpush.msra.mxu0 0.0
      %557 = vmatpush.msra.mxu0 0.0
      %558 = vmatpush.msra.mxu0 0.0
      %559 = vmatpush.msra.mxu0 0.0
      %560 = vmatpush.msra.mxu0 0.0
      %561 = vmatpush.msra.mxu0 0.0
      %562 = vmatpush.msra.mxu0 %v505
      %563 = vmatmul.f32.gmra.mxu0 %v499
      %v564 = vpop.f32.mrf.mxu0
      %v565 = vadd.f32 0.0, %v564
      %566 = vdwg.mxu0
      %v567 = vadd.f32 %v470, %v525
      %v568 = vadd.f32 %v471, %v545
      %v569 = vadd.f32 %v472, %v565
      %v570 = vld [vmem:[%s192] sm:$0xff]
      %v571 = vld [vmem:[%s192 + $0x8] sm:$0xff]
      %s572 = scalar_lea.vmem %s1, 32
      %v573 = vld [vmem:[%s572] sm:$0xff]
      %576 = vst [vmem:[#allocation1] ss:$2 sm:$0xff] %v570
      %s577 = scalar_lea.vmem [#allocation1], 16
      %578 = vst [vmem:[%s577] ss:$2 sm:$0xff] %v571
      %v579 = vld.sshfl [vmem:[#allocation1] sm:$0xff pattern:$0x75316420]
      %v580 = vld.sshfl [vmem:[#allocation1 + $0x8] sm:$0xff pattern:$0x75316420]
      %v581 = vld.sshfl [vmem:[#allocation1 + $0x10] sm:$0xff pattern:$0x75316420]
      %v582 = vld.sshfl [vmem:[#allocation1 + $0x18] sm:$0xff pattern:$0x75316420]
      %583 = vrot.lane.b32.xlu0 %v579, 109
      %v584 = vpop.permute.xlu0 %583
      %585 = vrot.lane.b32.xlu0 %v580, 109
      %v586 = vpop.permute.xlu0 %585
      %587 = vrot.lane.b32.xlu0 %v581, 109
      %v588 = vpop.permute.xlu0 %587
      %589 = vrot.lane.b32.xlu0 %v582, 109
      %v590 = vpop.permute.xlu0 %589
      %vm591 = vcmask 891904
      %v592 = vsel %vm591, %v584, %v586
      %v593 = vsel %vm591, %v586, %v588
      %v594 = vsel %vm591, %v588, %v590
      %v596 = vsel %vm228, %v573, 0
      %v598 = vsel %vm232, %v592, 0
      %v600 = vsel %vm232, %v593, 0
      %v602 = vsel %vm232, %v594, 0
      %604 = vmatpush.msra.mxu0 0.0
      %605 = vmatpush.msra.mxu0 0.0
      %606 = vmatpush.msra.mxu0 0.0
      %607 = vmatpush.msra.mxu0 0.0
      %608 = vmatpush.msra.mxu0 0.0
      %609 = vmatpush.msra.mxu0 0.0
      %610 = vmatpush.msra.mxu0 0.0
      %611 = vmatpush.msra.mxu0 0.0
      %612 = vmatpush.msra.mxu0 0.0
      %613 = vmatpush.msra.mxu0 0.0
      %614 = vmatpush.msra.mxu0 0.0
      %615 = vmatpush.msra.mxu0 0.0
      %616 = vmatpush.msra.mxu0 0.0
      %617 = vmatpush.msra.mxu0 0.0
      %618 = vmatpush.msra.mxu0 0.0
      %619 = vmatpush.msra.mxu0 %v598
      %620 = vmatmul.f32.gmra.mxu0 %v596
      %v621 = vpop.f32.mrf.mxu0
      %v622 = vadd.f32 0.0, %v621
      %623 = vdwg.mxu0
      %624 = vmatpush.msra.mxu0 0.0
      %625 = vmatpush.msra.mxu0 0.0
      %626 = vmatpush.msra.mxu0 0.0
      %627 = vmatpush.msra.mxu0 0.0
      %628 = vmatpush.msra.mxu0 0.0
      %629 = vmatpush.msra.mxu0 0.0
      %630 = vmatpush.msra.mxu0 0.0
      %631 = vmatpush.msra.mxu0 0.0
      %632 = vmatpush.msra.mxu0 0.0
      %633 = vmatpush.msra.mxu0 0.0
      %634 = vmatpush.msra.mxu0 0.0
      %635 = vmatpush.msra.mxu0 0.0
      %636 = vmatpush.msra.mxu0 0.0
      %637 = vmatpush.msra.mxu0 0.0
      %638 = vmatpush.msra.mxu0 0.0
      %639 = vmatpush.msra.mxu0 %v600
      %640 = vmatmul.f32.gmra.mxu0 %v596
      %v641 = vpop.f32.mrf.mxu0
      %v642 = vadd.f32 0.0, %v641
      %643 = vdwg.mxu0
      %644 = vmatpush.msra.mxu0 0.0
      %645 = vmatpush.msra.mxu0 0.0
      %646 = vmatpush.msra.mxu0 0.0
      %647 = vmatpush.msra.mxu0 0.0
      %648 = vmatpush.msra.mxu0 0.0
      %649 = vmatpush.msra.mxu0 0.0
      %650 = vmatpush.msra.mxu0 0.0
      %651 = vmatpush.msra.mxu0 0.0
      %652 = vmatpush.msra.mxu0 0.0
      %653 = vmatpush.msra.mxu0 0.0
      %654 = vmatpush.msra.mxu0 0.0
      %655 = vmatpush.msra.mxu0 0.0
      %656 = vmatpush.msra.mxu0 0.0
      %657 = vmatpush.msra.mxu0 0.0
      %658 = vmatpush.msra.mxu0 0.0
      %659 = vmatpush.msra.mxu0 %v602
      %660 = vmatmul.f32.gmra.mxu0 %v596
      %v661 = vpop.f32.mrf.mxu0
      %v662 = vadd.f32 0.0, %v661
      %663 = vdwg.mxu0
      %v664 = vadd.f32 %v567, %v622
      %v665 = vadd.f32 %v568, %v642
      %v666 = vadd.f32 %v569, %v662
      %v667 = vld [vmem:[%s192] sm:$0xff]
      %v668 = vld [vmem:[%s192 + $0x8] sm:$0xff]
      %s669 = scalar_lea.vmem %s1, 40
      %v670 = vld [vmem:[%s669] sm:$0xff]
      %673 = vst [vmem:[#allocation1] ss:$2 sm:$0xff] %v667
      %s674 = scalar_lea.vmem [#allocation1], 16
      %675 = vst [vmem:[%s674] ss:$2 sm:$0xff] %v668
      %v676 = vld.sshfl [vmem:[#allocation1] sm:$0xff pattern:$0x75316420]
      %v677 = vld.sshfl [vmem:[#allocation1 + $0x8] sm:$0xff pattern:$0x75316420]
      %v678 = vld.sshfl [vmem:[#allocation1 + $0x10] sm:$0xff pattern:$0x75316420]
      %v679 = vld.sshfl [vmem:[#allocation1 + $0x18] sm:$0xff pattern:$0x75316420]
      %680 = vrot.lane.b32.xlu0 %v676, 108
      %v681 = vpop.permute.xlu0 %680
      %682 = vrot.lane.b32.xlu0 %v677, 108
      %v683 = vpop.permute.xlu0 %682
      %684 = vrot.lane.b32.xlu0 %v678, 108
      %v685 = vpop.permute.xlu0 %684
      %686 = vrot.lane.b32.xlu0 %v679, 108
      %v687 = vpop.permute.xlu0 %686
      %vm688 = vcmask 883712
      %v689 = vsel %vm688, %v681, %v683
      %v690 = vsel %vm688, %v683, %v685
      %v691 = vsel %vm688, %v685, %v687
      %v693 = vsel %vm228, %v670, 0
      %v695 = vsel %vm232, %v689, 0
      %v697 = vsel %vm232, %v690, 0
      %v699 = vsel %vm232, %v691, 0
      %701 = vmatpush.msra.mxu0 0.0
      %702 = vmatpush.msra.mxu0 0.0
      %703 = vmatpush.msra.mxu0 0.0
      %704 = vmatpush.msra.mxu0 0.0
      %705 = vmatpush.msra.mxu0 0.0
      %706 = vmatpush.msra.mxu0 0.0
      %707 = vmatpush.msra.mxu0 0.0
      %708 = vmatpush.msra.mxu0 0.0
      %709 = vmatpush.msra.mxu0 0.0
      %710 = vmatpush.msra.mxu0 0.0
      %711 = vmatpush.msra.mxu0 0.0
      %712 = vmatpush.msra.mxu0 0.0
      %713 = vmatpush.msra.mxu0 0.0
      %714 = vmatpush.msra.mxu0 0.0
      %715 = vmatpush.msra.mxu0 0.0
      %716 = vmatpush.msra.mxu0 %v695
      %717 = vmatmul.f32.gmra.mxu0 %v693
      %v718 = vpop.f32.mrf.mxu0
      %v719 = vadd.f32 0.0, %v718
      %720 = vdwg.mxu0
      %721 = vmatpush.msra.mxu0 0.0
      %722 = vmatpush.msra.mxu0 0.0
      %723 = vmatpush.msra.mxu0 0.0
      %724 = vmatpush.msra.mxu0 0.0
      %725 = vmatpush.msra.mxu0 0.0
      %726 = vmatpush.msra.mxu0 0.0
      %727 = vmatpush.msra.mxu0 0.0
      %728 = vmatpush.msra.mxu0 0.0
      %729 = vmatpush.msra.mxu0 0.0
      %730 = vmatpush.msra.mxu0 0.0
      %731 = vmatpush.msra.mxu0 0.0
      %732 = vmatpush.msra.mxu0 0.0
      %733 = vmatpush.msra.mxu0 0.0
      %734 = vmatpush.msra.mxu0 0.0
      %735 = vmatpush.msra.mxu0 0.0
      %736 = vmatpush.msra.mxu0 %v697
      %737 = vmatmul.f32.gmra.mxu0 %v693
      %v738 = vpop.f32.mrf.mxu0
      %v739 = vadd.f32 0.0, %v738
      %740 = vdwg.mxu0
      %741 = vmatpush.msra.mxu0 0.0
      %742 = vmatpush.msra.mxu0 0.0
      %743 = vmatpush.msra.mxu0 0.0
      %744 = vmatpush.msra.mxu0 0.0
      %745 = vmatpush.msra.mxu0 0.0
      %746 = vmatpush.msra.mxu0 0.0
      %747 = vmatpush.msra.mxu0 0.0
      %748 = vmatpush.msra.mxu0 0.0
      %749 = vmatpush.msra.mxu0 0.0
      %750 = vmatpush.msra.mxu0 0.0
      %751 = vmatpush.msra.mxu0 0.0
      %752 = vmatpush.msra.mxu0 0.0
      %753 = vmatpush.msra.mxu0 0.0
      %754 = vmatpush.msra.mxu0 0.0
      %755 = vmatpush.msra.mxu0 0.0
      %756 = vmatpush.msra.mxu0 %v699
      %757 = vmatmul.f32.gmra.mxu0 %v693
      %v758 = vpop.f32.mrf.mxu0
      %v759 = vadd.f32 0.0, %v758
      %760 = vdwg.mxu0
      %v761 = vadd.f32 %v664, %v719
      %v762 = vadd.f32 %v665, %v739
      %v763 = vadd.f32 %v666, %v759
      %v764 = vld [vmem:[%s192] sm:$0xff]
      %v765 = vld [vmem:[%s192 + $0x8] sm:$0xff]
      %s766 = scalar_lea.vmem %s1, 48
      %v767 = vld [vmem:[%s766] sm:$0xff]
      %770 = vst [vmem:[#allocation1] ss:$2 sm:$0xff] %v764
      %s771 = scalar_lea.vmem [#allocation1], 16
      %772 = vst [vmem:[%s771] ss:$2 sm:$0xff] %v765
      %v773 = vld.sshfl [vmem:[#allocation1] sm:$0xff pattern:$0x75316420]
      %v774 = vld.sshfl [vmem:[#allocation1 + $0x8] sm:$0xff pattern:$0x75316420]
      %v775 = vld.sshfl [vmem:[#allocation1 + $0x10] sm:$0xff pattern:$0x75316420]
      %v776 = vld.sshfl [vmem:[#allocation1 + $0x18] sm:$0xff pattern:$0x75316420]
      %777 = vrot.lane.b32.xlu0 %v773, 92
      %v778 = vpop.permute.xlu0 %777
      %779 = vrot.lane.b32.xlu0 %v774, 92
      %v780 = vpop.permute.xlu0 %779
      %781 = vrot.lane.b32.xlu0 %v775, 92
      %v782 = vpop.permute.xlu0 %781
      %783 = vrot.lane.b32.xlu0 %v776, 92
      %v784 = vpop.permute.xlu0 %783
      %vm785 = vcmask 752640
      %v786 = vsel %vm785, %v778, %v780
      %v787 = vsel %vm785, %v780, %v782
      %v788 = vsel %vm785, %v782, %v784
      %v790 = vsel %vm228, %v767, 0
      %v792 = vsel %vm232, %v786, 0
      %v794 = vsel %vm232, %v787, 0
      %v796 = vsel %vm232, %v788, 0
      %798 = vmatpush.msra.mxu0 0.0
      %799 = vmatpush.msra.mxu0 0.0
      %800 = vmatpush.msra.mxu0 0.0
      %801 = vmatpush.msra.mxu0 0.0
      %802 = vmatpush.msra.mxu0 0.0
      %803 = vmatpush.msra.mxu0 0.0
      %804 = vmatpush.msra.mxu0 0.0
      %805 = vmatpush.msra.mxu0 0.0
      %806 = vmatpush.msra.mxu0 0.0
      %807 = vmatpush.msra.mxu0 0.0
      %808 = vmatpush.msra.mxu0 0.0
      %809 = vmatpush.msra.mxu0 0.0
      %810 = vmatpush.msra.mxu0 0.0
      %811 = vmatpush.msra.mxu0 0.0
      %812 = vmatpush.msra.mxu0 0.0
      %813 = vmatpush.msra.mxu0 %v792
      %814 = vmatmul.f32.gmra.mxu0 %v790
      %v815 = vpop.f32.mrf.mxu0
      %v816 = vadd.f32 0.0, %v815
      %817 = vdwg.mxu0
      %818 = vmatpush.msra.mxu0 0.0
      %819 = vmatpush.msra.mxu0 0.0
      %820 = vmatpush.msra.mxu0 0.0
      %821 = vmatpush.msra.mxu0 0.0
      %822 = vmatpush.msra.mxu0 0.0
      %823 = vmatpush.msra.mxu0 0.0
      %824 = vmatpush.msra.mxu0 0.0
      %825 = vmatpush.msra.mxu0 0.0
      %826 = vmatpush.msra.mxu0 0.0
      %827 = vmatpush.msra.mxu0 0.0
      %828 = vmatpush.msra.mxu0 0.0
      %829 = vmatpush.msra.mxu0 0.0
      %830 = vmatpush.msra.mxu0 0.0
      %831 = vmatpush.msra.mxu0 0.0
      %832 = vmatpush.msra.mxu0 0.0
      %833 = vmatpush.msra.mxu0 %v794
      %834 = vmatmul.f32.gmra.mxu0 %v790
      %v835 = vpop.f32.mrf.mxu0
      %v836 = vadd.f32 0.0, %v835
      %837 = vdwg.mxu0
      %838 = vmatpush.msra.mxu0 0.0
      %839 = vmatpush.msra.mxu0 0.0
      %840 = vmatpush.msra.mxu0 0.0
      %841 = vmatpush.msra.mxu0 0.0
      %842 = vmatpush.msra.mxu0 0.0
      %843 = vmatpush.msra.mxu0 0.0
      %844 = vmatpush.msra.mxu0 0.0
      %845 = vmatpush.msra.mxu0 0.0
      %846 = vmatpush.msra.mxu0 0.0
      %847 = vmatpush.msra.mxu0 0.0
      %848 = vmatpush.msra.mxu0 0.0
      %849 = vmatpush.msra.mxu0 0.0
      %850 = vmatpush.msra.mxu0 0.0
      %851 = vmatpush.msra.mxu0 0.0
      %852 = vmatpush.msra.mxu0 0.0
      %853 = vmatpush.msra.mxu0 %v796
      %854 = vmatmul.f32.gmra.mxu0 %v790
      %v855 = vpop.f32.mrf.mxu0
      %v856 = vadd.f32 0.0, %v855
      %857 = vdwg.mxu0
      %v858 = vadd.f32 %v761, %v816
      %v859 = vadd.f32 %v762, %v836
      %v860 = vadd.f32 %v763, %v856
      %v861 = vld [vmem:[%s192] sm:$0xff]
      %v862 = vld [vmem:[%s192 + $0x8] sm:$0xff]
      %s863 = scalar_lea.vmem %s1, 56
      %v864 = vld [vmem:[%s863] sm:$0xff]
      %867 = vst [vmem:[#allocation1] ss:$2 sm:$0xff] %v861
      %s868 = scalar_lea.vmem [#allocation1], 16
      %869 = vst [vmem:[%s868] ss:$2 sm:$0xff] %v862
      %v870 = vld.sshfl [vmem:[#allocation1] sm:$0xff pattern:$0x75316420]
      %v871 = vld.sshfl [vmem:[#allocation1 + $0x8] sm:$0xff pattern:$0x75316420]
      %v872 = vld.sshfl [vmem:[#allocation1 + $0x10] sm:$0xff pattern:$0x75316420]
      %v873 = vld.sshfl [vmem:[#allocation1 + $0x18] sm:$0xff pattern:$0x75316420]
      %874 = vrot.lane.b32.xlu0 %v870, 91
      %v875 = vpop.permute.xlu0 %874
      %876 = vrot.lane.b32.xlu0 %v871, 91
      %v877 = vpop.permute.xlu0 %876
      %878 = vrot.lane.b32.xlu0 %v872, 91
      %v879 = vpop.permute.xlu0 %878
      %880 = vrot.lane.b32.xlu0 %v873, 91
      %v881 = vpop.permute.xlu0 %880
      %vm882 = vcmask 744448
      %v883 = vsel %vm882, %v875, %v877
      %v884 = vsel %vm882, %v877, %v879
      %v885 = vsel %vm882, %v879, %v881
      %v887 = vsel %vm228, %v864, 0
      %v889 = vsel %vm232, %v883, 0
      %v891 = vsel %vm232, %v884, 0
      %v893 = vsel %vm232, %v885, 0
      %895 = vmatpush.msra.mxu0 0.0
      %896 = vmatpush.msra.mxu0 0.0
      %897 = vmatpush.msra.mxu0 0.0
      %898 = vmatpush.msra.mxu0 0.0
      %899 = vmatpush.msra.mxu0 0.0
      %900 = vmatpush.msra.mxu0 0.0
      %901 = vmatpush.msra.mxu0 0.0
      %902 = vmatpush.msra.mxu0 0.0
      %903 = vmatpush.msra.mxu0 0.0
      %904 = vmatpush.msra.mxu0 0.0
      %905 = vmatpush.msra.mxu0 0.0
      %906 = vmatpush.msra.mxu0 0.0
      %907 = vmatpush.msra.mxu0 0.0
      %908 = vmatpush.msra.mxu0 0.0
      %909 = vmatpush.msra.mxu0 0.0
      %910 = vmatpush.msra.mxu0 %v889
      %911 = vmatmul.f32.gmra.mxu0 %v887
      %v912 = vpop.f32.mrf.mxu0
      %v913 = vadd.f32 0.0, %v912
      %914 = vdwg.mxu0
      %915 = vmatpush.msra.mxu0 0.0
      %916 = vmatpush.msra.mxu0 0.0
      %917 = vmatpush.msra.mxu0 0.0
      %918 = vmatpush.msra.mxu0 0.0
      %919 = vmatpush.msra.mxu0 0.0
      %920 = vmatpush.msra.mxu0 0.0
      %921 = vmatpush.msra.mxu0 0.0
      %922 = vmatpush.msra.mxu0 0.0
      %923 = vmatpush.msra.mxu0 0.0
      %924 = vmatpush.msra.mxu0 0.0
      %925 = vmatpush.msra.mxu0 0.0
      %926 = vmatpush.msra.mxu0 0.0
      %927 = vmatpush.msra.mxu0 0.0
      %928 = vmatpush.msra.mxu0 0.0
      %929 = vmatpush.msra.mxu0 0.0
      %930 = vmatpush.msra.mxu0 %v891
      %931 = vmatmul.f32.gmra.mxu0 %v887
      %v932 = vpop.f32.mrf.mxu0
      %v933 = vadd.f32 0.0, %v932
      %934 = vdwg.mxu0
      %935 = vmatpush.msra.mxu0 0.0
      %936 = vmatpush.msra.mxu0 0.0
      %937 = vmatpush.msra.mxu0 0.0
      %938 = vmatpush.msra.mxu0 0.0
      %939 = vmatpush.msra.mxu0 0.0
      %940 = vmatpush.msra.mxu0 0.0
      %941 = vmatpush.msra.mxu0 0.0
      %942 = vmatpush.msra.mxu0 0.0
      %943 = vmatpush.msra.mxu0 0.0
      %944 = vmatpush.msra.mxu0 0.0
      %945 = vmatpush.msra.mxu0 0.0
      %946 = vmatpush.msra.mxu0 0.0
      %947 = vmatpush.msra.mxu0 0.0
      %948 = vmatpush.msra.mxu0 0.0
      %949 = vmatpush.msra.mxu0 0.0
      %950 = vmatpush.msra.mxu0 %v893
      %951 = vmatmul.f32.gmra.mxu0 %v887
      %v952 = vpop.f32.mrf.mxu0
      %v953 = vadd.f32 0.0, %v952
      %954 = vdwg.mxu0
      %v955 = vadd.f32 %v858, %v913
      %v956 = vadd.f32 %v859, %v933
      %v957 = vadd.f32 %v860, %v953
      %v958 = vld [vmem:[%s192] sm:$0xff]
      %v959 = vld [vmem:[%s192 + $0x8] sm:$0xff]
      %s960 = scalar_lea.vmem %s1, 64
      %v961 = vld [vmem:[%s960] sm:$0xff]
      %964 = vst [vmem:[#allocation1] ss:$2 sm:$0xff] %v958
      %s965 = scalar_lea.vmem [#allocation1], 16
      %966 = vst [vmem:[%s965] ss:$2 sm:$0xff] %v959
      %v967 = vld.sshfl [vmem:[#allocation1] sm:$0xff pattern:$0x75316420]
      %v968 = vld.sshfl [vmem:[#allocation1 + $0x8] sm:$0xff pattern:$0x75316420]
      %v969 = vld.sshfl [vmem:[#allocation1 + $0x10] sm:$0xff pattern:$0x75316420]
      %v970 = vld.sshfl [vmem:[#allocation1 + $0x18] sm:$0xff pattern:$0x75316420]
      %971 = vrot.lane.b32.xlu0 %v967, 90
      %v972 = vpop.permute.xlu0 %971
      %973 = vrot.lane.b32.xlu0 %v968, 90
      %v974 = vpop.permute.xlu0 %973
      %975 = vrot.lane.b32.xlu0 %v969, 90
      %v976 = vpop.permute.xlu0 %975
      %977 = vrot.lane.b32.xlu0 %v970, 90
      %v978 = vpop.permute.xlu0 %977
      %vm979 = vcmask 736256
      %v980 = vsel %vm979, %v972, %v974
      %v981 = vsel %vm979, %v974, %v976
      %v982 = vsel %vm979, %v976, %v978
      %v984 = vsel %vm228, %v961, 0
      %v986 = vsel %vm232, %v980, 0
      %v988 = vsel %vm232, %v981, 0
      %v990 = vsel %vm232, %v982, 0
      %992 = vmatpush.msra.mxu0 0.0
      %993 = vmatpush.msra.mxu0 0.0
      %994 = vmatpush.msra.mxu0 0.0
      %995 = vmatpush.msra.mxu0 0.0
      %996 = vmatpush.msra.mxu0 0.0
      %997 = vmatpush.msra.mxu0 0.0
      %998 = vmatpush.msra.mxu0 0.0
      %999 = vmatpush.msra.mxu0 0.0
      %1000 = vmatpush.msra.mxu0 0.0
      %1001 = vmatpush.msra.mxu0 0.0
      %1002 = vmatpush.msra.mxu0 0.0
      %1003 = vmatpush.msra.mxu0 0.0
      %1004 = vmatpush.msra.mxu0 0.0
      %1005 = vmatpush.msra.mxu0 0.0
      %1006 = vmatpush.msra.mxu0 0.0
      %1007 = vmatpush.msra.mxu0 %v986
      %1008 = vmatmul.f32.gmra.mxu0 %v984
      %v1009 = vpop.f32.mrf.mxu0
      %v1010 = vadd.f32 0.0, %v1009
      %1011 = vdwg.mxu0
      %1012 = vmatpush.msra.mxu0 0.0
      %1013 = vmatpush.msra.mxu0 0.0
      %1014 = vmatpush.msra.mxu0 0.0
      %1015 = vmatpush.msra.mxu0 0.0
      %1016 = vmatpush.msra.mxu0 0.0
      %1017 = vmatpush.msra.mxu0 0.0
      %1018 = vmatpush.msra.mxu0 0.0
      %1019 = vmatpush.msra.mxu0 0.0
      %1020 = vmatpush.msra.mxu0 0.0
      %1021 = vmatpush.msra.mxu0 0.0
      %1022 = vmatpush.msra.mxu0 0.0
      %1023 = vmatpush.msra.mxu0 0.0
      %1024 = vmatpush.msra.mxu0 0.0
      %1025 = vmatpush.msra.mxu0 0.0
      %1026 = vmatpush.msra.mxu0 0.0
      %1027 = vmatpush.msra.mxu0 %v988
      %1028 = vmatmul.f32.gmra.mxu0 %v984
      %v1029 = vpop.f32.mrf.mxu0
      %v1030 = vadd.f32 0.0, %v1029
      %1031 = vdwg.mxu0
      %1032 = vmatpush.msra.mxu0 0.0
      %1033 = vmatpush.msra.mxu0 0.0
      %1034 = vmatpush.msra.mxu0 0.0
      %1035 = vmatpush.msra.mxu0 0.0
      %1036 = vmatpush.msra.mxu0 0.0
      %1037 = vmatpush.msra.mxu0 0.0
      %1038 = vmatpush.msra.mxu0 0.0
      %1039 = vmatpush.msra.mxu0 0.0
      %1040 = vmatpush.msra.mxu0 0.0
      %1041 = vmatpush.msra.mxu0 0.0
      %1042 = vmatpush.msra.mxu0 0.0
      %1043 = vmatpush.msra.mxu0 0.0
      %1044 = vmatpush.msra.mxu0 0.0
      %1045 = vmatpush.msra.mxu0 0.0
      %1046 = vmatpush.msra.mxu0 0.0
      %1047 = vmatpush.msra.mxu0 %v990
      %1048 = vmatmul.f32.gmra.mxu0 %v984
      %v1049 = vpop.f32.mrf.mxu0
      %v1050 = vadd.f32 0.0, %v1049
      %1051 = vdwg.mxu0
      %v1052 = vadd.f32 %v955, %v1010
      %v1053 = vadd.f32 %v956, %v1030
      %v1054 = vadd.f32 %v957, %v1050
      %1056 = vset.pattern.permute.xlu0 0
      %1057 = vperm.xlu0 %1056, %v198
      %v1058 = vpop.permute.xlu0 %1057
      %v1060 = vmul.f32 %v1052, %v1058
      %v1061 = vmul.f32 %v1053, %v1058
      %v1062 = vmul.f32 %v1054, %v1058
      %1064 = vset.pattern.permute.xlu0 0
      %1065 = vperm.xlu0 %1064, %v199
      %v1066 = vpop.permute.xlu0 %1065
      %v1068 = vadd.f32 %v1060, %v1066
      %v1069 = vadd.f32 %v1061, %v1066
      %v1070 = vadd.f32 %v1062, %v1066
      %v1071 = vxor.u32 %v1068, 2147483648
      %v1072 = vxor.u32 %v1069, 2147483648
      %v1073 = vxor.u32 %v1070, 2147483648
      %v1074 = vmul.f32 %v1071, 1.442695
      %v1075 = vpow.pop %v1074
      %v1076 = vmul.f32 %v1072, 1.442695
      %v1077 = vpow.pop %v1076
      %v1078 = vmul.f32 %v1073, 1.442695
      %v1079 = vpow.pop %v1078
      %v1080 = vadd.f32 %v1075, 1.0
      %v1081 = vadd.f32 %v1077, 1.0
      %v1082 = vadd.f32 %v1079, 1.0
      %v1083 = vrcp.pop %v1080
      %v1084 = vmul.f32 %v1080, %v1083
      %v1085 = vsub.f32 1.0, %v1084
      %v1086 = vmul.f32 %v1083, %v1085
      %v1087 = vadd.f32 %v1083, %v1086
      %vm1088 = vweird.f32 %v1080
      %vm1089 = vweird.f32 %v1083
      %vm1090 = vmor %vm1088, %vm1089
      %v1091 = vsel %vm1090, %v1083, %v1087
      %v1092 = vand.u32 2147483647, %v1080
      %vm1093 = vcmp.eq.f32.partialorder %v1092, 8.507059e+37
      %v1094 = vand.u32 %v1080, 2147483648
      %v1095 = vor.u32 1.1754944e-38, %v1094
      %v1096 = vsel %vm1093, %v1095, %v1091
      %v1097 = vmul.f32 1.0, %v1096
      %v1098 = vrcp.pop %v1081
      %v1099 = vmul.f32 %v1081, %v1098
      %v1100 = vsub.f32 1.0, %v1099
      %v1101 = vmul.f32 %v1098, %v1100
      %v1102 = vadd.f32 %v1098, %v1101
      %vm1103 = vweird.f32 %v1081
      %vm1104 = vweird.f32 %v1098
      %vm1105 = vmor %vm1103, %vm1104
      %v1106 = vsel %vm1105, %v1098, %v1102
      %v1107 = vand.u32 2147483647, %v1081
      %vm1108 = vcmp.eq.f32.partialorder %v1107, 8.507059e+37
      %v1109 = vand.u32 %v1081, 2147483648
      %v1110 = vor.u32 1.1754944e-38, %v1109
      %v1111 = vsel %vm1108, %v1110, %v1106
      %v1112 = vmul.f32 1.0, %v1111
      %v1113 = vrcp.pop %v1082
      %v1114 = vmul.f32 %v1082, %v1113
      %v1115 = vsub.f32 1.0, %v1114
      %v1116 = vmul.f32 %v1113, %v1115
      %v1117 = vadd.f32 %v1113, %v1116
      %vm1118 = vweird.f32 %v1082
      %vm1119 = vweird.f32 %v1113
      %vm1120 = vmor %vm1118, %vm1119
      %v1121 = vsel %vm1120, %v1113, %v1117
      %v1122 = vand.u32 2147483647, %v1082
      %vm1123 = vcmp.eq.f32.partialorder %v1122, 8.507059e+37
      %v1124 = vand.u32 %v1082, 2147483648
      %v1125 = vor.u32 1.1754944e-38, %v1124
      %v1126 = vsel %vm1123, %v1125, %v1121
      %v1127 = vmul.f32 1.0, %v1126
      %v1128 = vmul.f32 %v1068, %v1097
      %v1129 = vmul.f32 %v1069, %v1112
      %v1130 = vmul.f32 %v1070, %v1127
      %1131 = vst [vmem:[%s197] sm:$0xff] %v1128
      %1132 = vst [vmem:[%s197 + $0x8] sm:$0xff] %v1129
      %1133 = vst [vmem:[%s197 + $0x10] sm:$0xff] %v1130
      %p1134 = scmp.lt.s32.totalorder %s15, 1
      %s1135 = scalar_select %p1134, %s15, 1
      %s1136 = smul.addr %s1135, 3
      %s1137 = smul.addr %s1136, 8
      %s1138 = scalar_lea.vmem %s4, %s1137
      // Predicated region
      $region37: #{conv_layer_forward.1} parent=35 // pred_check
        %p1139 = pneg %p122
      $region38: #{conv_layer_forward.1} parent=35 // pred_check_branch
        %1141 = sbr.rel (%p1139) target = $region40
      $region39: #{conv_layer_forward.1} parent=35 // pred_region
        _
      $region40: #{conv_layer_forward.1} parent=35 // pred_fallthru
        _
    $region36: #{conv_layer_forward.1} parent=5 // pred_fallthru
      _
    %p1142 = scmp.le.s32.totalorder 2, %s10
    // Predicated region
    $region41: #{conv_layer_forward.1} parent=5 // pred_check
      %p1143 = pneg %p1142
    $region42: #{conv_layer_forward.1} parent=5 // pred_check_branch
      %1145 = sbr.rel (%p1143) target = $region44
    $region43: #{conv_layer_forward.1} parent=5 // pred_region
      %s1146 = ssub.s32 %s10, 2
      // Predicated region
      $region45: #{conv_layer_forward.1} parent=43 // pred_check
        %p1147 = pneg %p128
      $region46: #{conv_layer_forward.1} parent=43 // pred_check_branch
        %1149 = sbr.rel (%p1147) target = $region48
      $region47: #{conv_layer_forward.1} parent=43 // pred_region
        %p1150 = scmp.lt.s32.totalorder %s16, 1
        %s1151 = scalar_select %p1150, %s16, 1
        %s1152 = smul.addr %s1151, 3
        %s1153 = smul.addr %s1152, 8
        %s1154 = scalar_lea.vmem %s4, %s1153
      $region48: #{conv_layer_forward.1} parent=43 // pred_fallthru
        _
    $region44: #{conv_layer_forward.1} parent=5 // pred_fallthru
      _
  $region6: #{conv_layer_forward.1} parent=0 // loop_footer
    %s14 = sadd.s32 1, %s10
  $region7: #{conv_layer_forward.1} parent=0 // loop_footer_branch
    %9 = sbr.rel target = $region3
  $region8: #{conv_layer_forward.1} parent=0 // loop_exit
    _

</llo_original>
